<compile_context>
chip_gen: v7x
topology: tpu7x:2x2x1
jax: 0.10.0
libtpu: 0.0.40
codegen_flags: <defaults>
</compile_context>

<pallas_src>
import functools

import jax
import jax.numpy as jnp
import numpy as np
from jax import lax
from jax.experimental import pallas as pl
from jax.experimental.pallas import tpu as pltpu


def _make_lru_kernel(dt, activation, *, time_block, seq_len, needs_mask,
                     return_sequences):
    linear = activation == "linear"
    if activation == "tanh":
        act = jnp.tanh
    elif activation == "hardtanh":
        act = lambda z: jnp.clip(z, -1.0, 1.0)
    elif not linear:
        raise ValueError(f"unknown activation {activation!r}")

    # Short fixed loops: full unroll; long loops: unroll by 8 so the scheduler
    # can interleave independent vreg chains while keeping code size sane.
    unroll = True if time_block <= 16 else 8

    def kernel(params_ref, x_ref, o_ref, h_ref):
        t_blk = pl.program_id(1)

        @pl.when(t_blk == 0)
        def _init():
            h_ref[...] = jnp.zeros_like(h_ref)

        bt, _, hdim = h_ref.shape
        # Hoist the parameter broadcasts out of the time loop (no CSE of
        # broadcast_in_dim inside loops).
        p0 = jnp.broadcast_to(params_ref[0:1, :, :], (bt, 1, hdim))
        p1 = jnp.broadcast_to(params_ref[1:2, :, :], (bt, 1, hdim))

        def body(t, h):
            x_t = x_ref[:, pl.ds(t, 1), :]          # (Bt, 1, H)
            if linear:
                # constants pre-folded: p0 = 1 + dt*w, p1 = dt*w_res
                h_new = h * p0 + x_t * p1
            else:
                z = act(h * p0 + x_t * p1)
                h_new = (h + z) if dt == 1.0 else (h + dt * z)
            if needs_mask:
                g = t_blk * time_block + t          # global timestep
                h_new = jnp.where(g < seq_len, h_new, h)
            if return_sequences:
                o_ref[:, pl.ds(t, 1), :] = h_new
            return h_new

        h_final = lax.fori_loop(0, time_block, body, h_ref[...], unroll=unroll)
        h_ref[...] = h_final

        if not return_sequences:
            @pl.when(t_blk == pl.num_programs(1) - 1)
            def _final():
                o_ref[...] = h_final

    return kernel


@functools.partial(jax.jit, static_argnames=("dt", "activation",
                                             "return_sequences"))
def lru_forward(x, weight, dt: float = 1.0, activation: str = "linear",
                return_sequences: bool = True):
    """x: (B, L, H), weight: (H,) (the raw nn.Parameter)."""
    B, L, H = x.shape
    x = x.astype(jnp.float32)

    # Parameter transform (glue, plain JAX): w in (-1, 0], w_res = sqrt(1-w^2)
    w = jnp.exp(-jnp.exp(weight.astype(jnp.float32))) - 1.0       # (H,)
    w_res = jnp.sqrt(1.0 - w * w)                                  # (H,)
    if activation == "linear":
        p0 = 1.0 + dt * w      # h * (1 + dt*w)
        p1 = dt * w_res        # x * (dt*w_res)
    else:
        p0 = w
        p1 = w_res
    params = jnp.stack([p0, p1], axis=0).reshape(2, 1, H)

    # Time blocking: T timesteps per grid step (multiple of 8, or == L).
    T = L if L <= 256 else 256
    L_pad = -(-L // T) * T
    needs_mask = L_pad != L
    if needs_mask:
        x = jnp.pad(x, ((0, 0), (0, L_pad - L), (0, 0)))

    # Split batch only when large enough that it doesn't lengthen the serial
    # recurrence on 1-TC chips; on v7x the "parallel" axis shards across cores.
    Bt = B // 2 if (B >= 8 and B % 2 == 0) else B
    grid = (B // Bt, L_pad // T)

    kernel = _make_lru_kernel(float(dt), activation, time_block=T, seq_len=L,
                              needs_mask=needs_mask,
                              return_sequences=return_sequences)

    if return_sequences:
        out_shape = jax.ShapeDtypeStruct((B, L_pad, H), jnp.float32)
        out_spec = pl.BlockSpec((Bt, T, H), lambda b, t: (b, t, 0))
    else:
        out_shape = jax.ShapeDtypeStruct((B, 1, H), jnp.float32)
        out_spec = pl.BlockSpec((Bt, 1, H), lambda b, t: (b, 0, 0))

    out = pl.pallas_call(
        kernel,
        out_shape=out_shape,
        grid_spec=pltpu.PrefetchScalarGridSpec(
            num_scalar_prefetch=0,
            grid=grid,
            in_specs=[
                pl.BlockSpec((2, 1, H), lambda b, t: (0, 0, 0)),   # params
                pl.BlockSpec((Bt, T, H), lambda b, t: (b, t, 0)),  # x block
            ],
            out_specs=out_spec,
            scratch_shapes=[pltpu.VMEM((Bt, 1, H), jnp.float32)],  # hidden h
        ),
        compiler_params=pltpu.CompilerParams(
            # batch axis independent, time axis carries the recurrence
            dimension_semantics=("parallel", "arbitrary"),
        ),
    )(params, x)

    if return_sequences:
        return out[:, :L, :] if needs_mask else out
    return out[:, 0, :]


def lru_reference(x, weight, dt: float = 1.0, activation: str = "linear"):
    """Pure-JAX reference (mirrors the PyTorch loop) for correctness check."""
    if activation == "linear":
        act = lambda z: z
    elif activation == "tanh":
        act = jnp.tanh
    else:
        act = lambda z: jnp.clip(z, -1.0, 1.0)

    w = jnp.exp(-jnp.exp(weight)) - 1.0
    w_res = jnp.sqrt(1.0 - w * w)

    def step(h, x_t):
        h_next = h + dt * act(h * w + x_t * w_res)
        return h_next, h_next

    h0 = jnp.zeros((x.shape[0], x.shape[2]), x.dtype)
    _, hs = jax.lax.scan(step, h0, jnp.transpose(x, (1, 0, 2)))
    return jnp.transpose(hs, (1, 0, 2))


if __name__ == "__main__":
    # Small shapes consistent with the module's (batch, seq, rec1_size) input.
    B, L, H = 2, 8, 32

    key = jax.random.PRNGKey(0)
    k_x, k_w = jax.random.split(key)
    x = jax.random.normal(k_x, (B, L, H), dtype=jnp.float32)
    weight = jax.random.normal(k_w, (H,), dtype=jnp.float32)  # ~torch.randn(H)

    # linear, return_sequences=True
    out = lru_forward(x, weight, dt=1.0, activation="linear",
                      return_sequences=True)
    out = jax.block_until_ready(out)
    ref = lru_reference(x, weight, dt=1.0, activation="linear")
    np.testing.assert_allclose(np.asarray(out), np.asarray(ref),
                               rtol=1e-5, atol=1e-5)
    assert out.shape == (B, L, H)

    # tanh, dt != 1
    out_t = jax.block_until_ready(
        lru_forward(x, weight, dt=0.5, activation="tanh",
                    return_sequences=True))
    ref_t = lru_reference(x, weight, dt=0.5, activation="tanh")
    np.testing.assert_allclose(np.asarray(out_t), np.asarray(ref_t),
                               rtol=1e-5, atol=1e-5)

    # linear, return_sequences=False (final-state-only output path)
    out_last = jax.block_until_ready(
        lru_forward(x, weight, dt=1.0, activation="linear",
                    return_sequences=False))
    np.testing.assert_allclose(np.asarray(out_last), np.asarray(ref)[:, -1, :],
                               rtol=1e-5, atol=1e-5)

    print("KERNEL_OK")
</pallas_src>

<mosaic_0001>
module attributes {stable_mosaic.version = 11 : i64} {
  func.func @kernel(%arg0: i32, %arg1: i32, %arg2: memref<2x1x32xf32, #tpu.memory_space<vmem>>, %arg3: memref<2x8x32xf32, #tpu.memory_space<vmem>>, %arg4: memref<2x8x32xf32, #tpu.memory_space<vmem>>, %arg5: memref<2x1x32xf32, #tpu.memory_space<vmem>>) attributes {dimension_semantics = [#tpu.dimension_semantics<parallel>, #tpu.dimension_semantics<arbitrary>], iteration_bounds = array<i64: 1, 1>, scalar_prefetch = 0 : i64, scratch_operands = 1 : i64, tpu.core_type = #tpu.core_type<tc>, window_params = [{pipeline_mode = #tpu.pipeline_mode<synchronous>, transform_indices = @transform_0, window_bounds = array<i64: 2, 1, 32>}, {transform_indices = @transform_1, window_bounds = array<i64: 2, 8, 32>}, {transform_indices = @transform_2, window_bounds = array<i64: 2, 8, 32>}]} {
    %c0_i32 = arith.constant 0 : i32
    %0 = arith.cmpi eq, %arg1, %c0_i32 : i32
    %1 = arith.extui %0 : i1 to i32
    %c0_i32_0 = arith.constant 0 : i32
    %2 = arith.cmpi ne, %1, %c0_i32_0 : i32
    scf.if %2 {
      %cst = arith.constant 0.000000e+00 : f32
      %67 = vector.broadcast %cst : f32 to vector<2x1x32xf32>
      %c0_44 = arith.constant 0 : index
      %c0_45 = arith.constant 0 : index
      %c0_46 = arith.constant 0 : index
      %68 = vector.load %arg5[%c0_44, %c0_45, %c0_46] : memref<2x1x32xf32, #tpu.memory_space<vmem>>, vector<2x1x32xf32>
      tpu.vector_store %arg5[%c0_44, %c0_45, %c0_46], %67 {strides = array<i32>} : memref<2x1x32xf32, #tpu.memory_space<vmem>>, vector<2x1x32xf32>,
    } else {
    }
    %c0 = arith.constant 0 : index
    %c0_1 = arith.constant 0 : index
    %c0_2 = arith.constant 0 : index
    %3 = vector.load %arg2[%c0, %c0_1, %c0_2] : memref<2x1x32xf32, #tpu.memory_space<vmem>>, vector<1x1x32xf32>
    %4 = vector.shape_cast %3 : vector<1x1x32xf32> to vector<1x1x32xf32>
    %5 = vector.broadcast %4 : vector<1x1x32xf32> to vector<2x1x32xf32>
    %c1 = arith.constant 1 : index
    %c0_3 = arith.constant 0 : index
    %c0_4 = arith.constant 0 : index
    %6 = vector.load %arg2[%c1, %c0_3, %c0_4] : memref<2x1x32xf32, #tpu.memory_space<vmem>>, vector<1x1x32xf32>
    %7 = vector.shape_cast %6 : vector<1x1x32xf32> to vector<1x1x32xf32>
    %8 = vector.broadcast %7 : vector<1x1x32xf32> to vector<2x1x32xf32>
    %c0_5 = arith.constant 0 : index
    %c0_6 = arith.constant 0 : index
    %c0_7 = arith.constant 0 : index
    %9 = vector.load %arg5[%c0_5, %c0_6, %c0_7] : memref<2x1x32xf32, #tpu.memory_space<vmem>>, vector<2x1x32xf32>
    %c0_i32_8 = arith.constant 0 : i32
    %c0_9 = arith.constant 0 : index
    %10 = arith.index_cast %c0_i32_8 : i32 to index
    %c0_10 = arith.constant 0 : index
    %11 = vector.load %arg3[%c0_9, %10, %c0_10] : memref<2x8x32xf32, #tpu.memory_space<vmem>>, vector<2x1x32xf32>
    %12 = arith.mulf %9, %5 : vector<2x1x32xf32>
    %13 = arith.mulf %11, %8 : vector<2x1x32xf32>
    %14 = arith.addf %12, %13 : vector<2x1x32xf32>
    %c0_11 = arith.constant 0 : index
    %15 = arith.index_cast %c0_i32_8 : i32 to index
    %c0_12 = arith.constant 0 : index
    %16 = vector.load %arg4[%c0_11, %15, %c0_12] : memref<2x8x32xf32, #tpu.memory_space<vmem>>, vector<2x1x32xf32>
    tpu.vector_store %arg4[%c0_11, %15, %c0_12], %14 {strides = array<i32>} : memref<2x8x32xf32, #tpu.memory_space<vmem>>, vector<2x1x32xf32>,
    %c1_i32 = arith.constant 1 : i32
    %c0_13 = arith.constant 0 : index
    %17 = arith.index_cast %c1_i32 : i32 to index
    %c0_14 = arith.constant 0 : index
    %18 = vector.load %arg3[%c0_13, %17, %c0_14] : memref<2x8x32xf32, #tpu.memory_space<vmem>>, vector<2x1x32xf32>
    %19 = arith.mulf %14, %5 : vector<2x1x32xf32>
    %20 = arith.mulf %18, %8 : vector<2x1x32xf32>
    %21 = arith.addf %19, %20 : vector<2x1x32xf32>
    %c0_15 = arith.constant 0 : index
    %22 = arith.index_cast %c1_i32 : i32 to index
    %c0_16 = arith.constant 0 : index
    %23 = vector.load %arg4[%c0_15, %22, %c0_16] : memref<2x8x32xf32, #tpu.memory_space<vmem>>, vector<2x1x32xf32>
    tpu.vector_store %arg4[%c0_15, %22, %c0_16], %21 {strides = array<i32>} : memref<2x8x32xf32, #tpu.memory_space<vmem>>, vector<2x1x32xf32>,
    %c2_i32 = arith.constant 2 : i32
    %c0_17 = arith.constant 0 : index
    %24 = arith.index_cast %c2_i32 : i32 to index
    %c0_18 = arith.constant 0 : index
    %25 = vector.load %arg3[%c0_17, %24, %c0_18] : memref<2x8x32xf32, #tpu.memory_space<vmem>>, vector<2x1x32xf32>
    %26 = arith.mulf %21, %5 : vector<2x1x32xf32>
    %27 = arith.mulf %25, %8 : vector<2x1x32xf32>
    %28 = arith.addf %26, %27 : vector<2x1x32xf32>
    %c0_19 = arith.constant 0 : index
    %29 = arith.index_cast %c2_i32 : i32 to index
    %c0_20 = arith.constant 0 : index
    %30 = vector.load %arg4[%c0_19, %29, %c0_20] : memref<2x8x32xf32, #tpu.memory_space<vmem>>, vector<2x1x32xf32>
    tpu.vector_store %arg4[%c0_19, %29, %c0_20], %28 {strides = array<i32>} : memref<2x8x32xf32, #tpu.memory_space<vmem>>, vector<2x1x32xf32>,
    %c3_i32 = arith.constant 3 : i32
    %c0_21 = arith.constant 0 : index
    %31 = arith.index_cast %c3_i32 : i32 to index
    %c0_22 = arith.constant 0 : index
    %32 = vector.load %arg3[%c0_21, %31, %c0_22] : memref<2x8x32xf32, #tpu.memory_space<vmem>>, vector<2x1x32xf32>
    %33 = arith.mulf %28, %5 : vector<2x1x32xf32>
    %34 = arith.mulf %32, %8 : vector<2x1x32xf32>
    %35 = arith.addf %33, %34 : vector<2x1x32xf32>
    %c0_23 = arith.constant 0 : index
    %36 = arith.index_cast %c3_i32 : i32 to index
    %c0_24 = arith.constant 0 : index
    %37 = vector.load %arg4[%c0_23, %36, %c0_24] : memref<2x8x32xf32, #tpu.memory_space<vmem>>, vector<2x1x32xf32>
    tpu.vector_store %arg4[%c0_23, %36, %c0_24], %35 {strides = array<i32>} : memref<2x8x32xf32, #tpu.memory_space<vmem>>, vector<2x1x32xf32>,
    %c4_i32 = arith.constant 4 : i32
    %c0_25 = arith.constant 0 : index
    %38 = arith.index_cast %c4_i32 : i32 to index
    %c0_26 = arith.constant 0 : index
    %39 = vector.load %arg3[%c0_25, %38, %c0_26] : memref<2x8x32xf32, #tpu.memory_space<vmem>>, vector<2x1x32xf32>
    %40 = arith.mulf %35, %5 : vector<2x1x32xf32>
    %41 = arith.mulf %39, %8 : vector<2x1x32xf32>
    %42 = arith.addf %40, %41 : vector<2x1x32xf32>
    %c0_27 = arith.constant 0 : index
    %43 = arith.index_cast %c4_i32 : i32 to index
    %c0_28 = arith.constant 0 : index
    %44 = vector.load %arg4[%c0_27, %43, %c0_28] : memref<2x8x32xf32, #tpu.memory_space<vmem>>, vector<2x1x32xf32>
    tpu.vector_store %arg4[%c0_27, %43, %c0_28], %42 {strides = array<i32>} : memref<2x8x32xf32, #tpu.memory_space<vmem>>, vector<2x1x32xf32>,
    %c5_i32 = arith.constant 5 : i32
    %c0_29 = arith.constant 0 : index
    %45 = arith.index_cast %c5_i32 : i32 to index
    %c0_30 = arith.constant 0 : index
    %46 = vector.load %arg3[%c0_29, %45, %c0_30] : memref<2x8x32xf32, #tpu.memory_space<vmem>>, vector<2x1x32xf32>
    %47 = arith.mulf %42, %5 : vector<2x1x32xf32>
    %48 = arith.mulf %46, %8 : vector<2x1x32xf32>
    %49 = arith.addf %47, %48 : vector<2x1x32xf32>
    %c0_31 = arith.constant 0 : index
    %50 = arith.index_cast %c5_i32 : i32 to index
    %c0_32 = arith.constant 0 : index
    %51 = vector.load %arg4[%c0_31, %50, %c0_32] : memref<2x8x32xf32, #tpu.memory_space<vmem>>, vector<2x1x32xf32>
    tpu.vector_store %arg4[%c0_31, %50, %c0_32], %49 {strides = array<i32>} : memref<2x8x32xf32, #tpu.memory_space<vmem>>, vector<2x1x32xf32>,
    %c6_i32 = arith.constant 6 : i32
    %c0_33 = arith.constant 0 : index
    %52 = arith.index_cast %c6_i32 : i32 to index
    %c0_34 = arith.constant 0 : index
    %53 = vector.load %arg3[%c0_33, %52, %c0_34] : memref<2x8x32xf32, #tpu.memory_space<vmem>>, vector<2x1x32xf32>
    %54 = arith.mulf %49, %5 : vector<2x1x32xf32>
    %55 = arith.mulf %53, %8 : vector<2x1x32xf32>
    %56 = arith.addf %54, %55 : vector<2x1x32xf32>
    %c0_35 = arith.constant 0 : index
    %57 = arith.index_cast %c6_i32 : i32 to index
    %c0_36 = arith.constant 0 : index
    %58 = vector.load %arg4[%c0_35, %57, %c0_36] : memref<2x8x32xf32, #tpu.memory_space<vmem>>, vector<2x1x32xf32>
    tpu.vector_store %arg4[%c0_35, %57, %c0_36], %56 {strides = array<i32>} : memref<2x8x32xf32, #tpu.memory_space<vmem>>, vector<2x1x32xf32>,
    %c7_i32 = arith.constant 7 : i32
    %c0_37 = arith.constant 0 : index
    %59 = arith.index_cast %c7_i32 : i32 to index
    %c0_38 = arith.constant 0 : index
    %60 = vector.load %arg3[%c0_37, %59, %c0_38] : memref<2x8x32xf32, #tpu.memory_space<vmem>>, vector<2x1x32xf32>
    %61 = arith.mulf %56, %5 : vector<2x1x32xf32>
    %62 = arith.mulf %60, %8 : vector<2x1x32xf32>
    %63 = arith.addf %61, %62 : vector<2x1x32xf32>
    %c0_39 = arith.constant 0 : index
    %64 = arith.index_cast %c7_i32 : i32 to index
    %c0_40 = arith.constant 0 : index
    %65 = vector.load %arg4[%c0_39, %64, %c0_40] : memref<2x8x32xf32, #tpu.memory_space<vmem>>, vector<2x1x32xf32>
    tpu.vector_store %arg4[%c0_39, %64, %c0_40], %63 {strides = array<i32>} : memref<2x8x32xf32, #tpu.memory_space<vmem>>, vector<2x1x32xf32>,
    %c8_i32 = arith.constant 8 : i32
    %c0_41 = arith.constant 0 : index
    %c0_42 = arith.constant 0 : index
    %c0_43 = arith.constant 0 : index
    %66 = vector.load %arg5[%c0_41, %c0_42, %c0_43] : memref<2x1x32xf32, #tpu.memory_space<vmem>>, vector<2x1x32xf32>
    tpu.vector_store %arg5[%c0_41, %c0_42, %c0_43], %63 {strides = array<i32>} : memref<2x1x32xf32, #tpu.memory_space<vmem>>, vector<2x1x32xf32>,
    return
  }
  func.func @transform_0(%arg0: i32, %arg1: i32) -> (i32, i32, i32) {
    %c0_i32 = arith.constant 0 : i32
    %c0_i32_0 = arith.constant 0 : i32
    %c0_i32_1 = arith.constant 0 : i32
    %c0_i32_2 = arith.constant 0 : i32
    return %c0_i32, %c0_i32_0, %c0_i32_1 : i32, i32, i32
  }
  func.func @transform_1(%arg0: i32, %arg1: i32) -> (i32, i32, i32) {
    %c0_i32 = arith.constant 0 : i32
    %c0_i32_0 = arith.constant 0 : i32
    return %arg0, %arg1, %c0_i32 : i32, i32, i32
  }
  func.func @transform_2(%arg0: i32, %arg1: i32) -> (i32, i32, i32) {
    %c0_i32 = arith.constant 0 : i32
    %c0_i32_0 = arith.constant 0 : i32
    return %arg0, %arg1, %c0_i32 : i32, i32, i32
  }
}

</mosaic_0001>

<llo_original>
// kernel: lru_forward.1
$region0: #{lru_forward.1}
  #allocation0 [shape = 'u32[]', space=smem, size = 0x4, offset = 0x4, fixed_abs, tag = 'smem constant byte address 0x4 - core index']
  #allocation1 [shape = 'u32[144,128]{1,0:T(1,128)}', space=vmem, size = 0x12000, scoped, tag = 'internal scratch']
  #allocation2 [shape = 'f32[2,1,32]{2,1,0:T(1,128)}', space=vmem, size = 0x400, scoped, tag = 'scratch operand']
  %s0 = inlined_call_operand.vmem [shape: f32[2,1,32], index: 0, kind: input, shape index: {}]
  %s1 = inlined_call_operand.vmem [shape: f32[2,8,32], index: 1, kind: input, shape index: {}]
  %s2 = inlined_call_operand.hbm [shape: f32[2,8,32], index: 2, kind: output, shape index: {}]
  %s3 = sld [smem:[#allocation0]]
  $region22: #{lru_forward.1} parent=0
    _
  %s5 = ssub.s32 1, %s3
  %s6 = scalar_select 0, %s5, %s3
  $region1: #{lru_forward.1} parent=0
    #allocation3 [shape = 'u8[8192]{0}', space=vmem, size = 0x2000, scoped, tag = 'output window, operand 0, single buffered']
    #allocation4 [shape = 's32[1]{0}', space=sflag, size = 0x4, scoped, tag = 'scoped memory for lru_forward.1']
    %7 = vsyncpa [#allocation4], 0
    // Predicated region
    $region2: #{lru_forward.1} parent=1 // pred_check
      _
    $region3: #{lru_forward.1} parent=1 // pred_check_branch
      %9 = sbr.rel (0) target = $region5
    $region4: #{lru_forward.1} parent=1 // pred_region
      _
    $region5: #{lru_forward.1} parent=1 // pred_fallthru
      _
    // Predicated region
    $region6: #{lru_forward.1} parent=1 // pred_check
      _
    $region7: #{lru_forward.1} parent=1 // pred_check_branch
      %11 = sbr.rel (0) target = $region9
    $region8: #{lru_forward.1} parent=1 // pred_region
      _
    $region9: #{lru_forward.1} parent=1 // pred_fallthru
      _
    %p12 = scmp.eq.s32.totalorder 0, 0
    // Predicated region
    $region10: #{lru_forward.1} parent=1 // pred_check
      %p13 = pneg %p12
    $region11: #{lru_forward.1} parent=1 // pred_check_branch
      %15 = sbr.rel (%p13) target = $region13
    $region12: #{lru_forward.1} parent=1 // pred_region
      %vm16 = vcmask 253952
      %17 = vst.msk [vmem:[#allocation2] sm:$0x1] %vm16, 0.0
      %18 = vst.msk [vmem:[#allocation2 + $0x1] sm:$0x1] %vm16, 0.0
    $region13: #{lru_forward.1} parent=1 // pred_fallthru
      _
    %v19 = vld [vmem:[%s0] sm:$0x1]
    %s20 = scalar_lea.vmem %s0, 1
    %v21 = vld [vmem:[%s20] sm:$0x1]
    %v22 = vld [vmem:[#allocation2] sm:$0x1]
    %v23 = vld [vmem:[#allocation2 + $0x1] sm:$0x1]
    %v24 = vld [vmem:[%s1] sm:$0x1]
    %v25 = vld [vmem:[%s1 + $0x8] sm:$0x1]
    %v26 = vmul.f32 %v22, %v19
    %v27 = vmul.f32 %v23, %v19
    %v28 = vmul.f32 %v24, %v21
    %v29 = vmul.f32 %v25, %v21
    %v30 = vadd.f32 %v26, %v28
    %v31 = vadd.f32 %v27, %v29
    %vm32 = vcmask 253952
    %33 = vst.msk [vmem:[#allocation3] sm:$0x1] %vm32, %v30
    %34 = vst.msk [vmem:[#allocation3 + $0x8] sm:$0x1] %vm32, %v31
    %v35 = vld [vmem:[%s1 + $0x1] sm:$0x1]
    %v36 = vld [vmem:[%s1 + $0x9] sm:$0x1]
    %v37 = vmul.f32 %v30, %v19
    %v38 = vmul.f32 %v31, %v19
    %v39 = vmul.f32 %v35, %v21
    %v40 = vmul.f32 %v36, %v21
    %v41 = vadd.f32 %v37, %v39
    %v42 = vadd.f32 %v38, %v40
    %43 = vst.msk [vmem:[#allocation3 + $0x1] sm:$0x1] %vm32, %v41
    %44 = vst.msk [vmem:[#allocation3 + $0x9] sm:$0x1] %vm32, %v42
    %v45 = vld [vmem:[%s1 + $0x2] sm:$0x1]
    %v46 = vld [vmem:[%s1 + $0xa] sm:$0x1]
    %v47 = vmul.f32 %v41, %v19
    %v48 = vmul.f32 %v42, %v19
    %v49 = vmul.f32 %v45, %v21
    %v50 = vmul.f32 %v46, %v21
    %v51 = vadd.f32 %v47, %v49
    %v52 = vadd.f32 %v48, %v50
    %53 = vst.msk [vmem:[#allocation3 + $0x2] sm:$0x1] %vm32, %v51
    %54 = vst.msk [vmem:[#allocation3 + $0xa] sm:$0x1] %vm32, %v52
    %v55 = vld [vmem:[%s1 + $0x3] sm:$0x1]
    %v56 = vld [vmem:[%s1 + $0xb] sm:$0x1]
    %v57 = vmul.f32 %v51, %v19
    %v58 = vmul.f32 %v52, %v19
    %v59 = vmul.f32 %v55, %v21
    %v60 = vmul.f32 %v56, %v21
    %v61 = vadd.f32 %v57, %v59
    %v62 = vadd.f32 %v58, %v60
    %63 = vst.msk [vmem:[#allocation3 + $0x3] sm:$0x1] %vm32, %v61
    %64 = vst.msk [vmem:[#allocation3 + $0xb] sm:$0x1] %vm32, %v62
    %v65 = vld [vmem:[%s1 + $0x4] sm:$0x1]
    %v66 = vld [vmem:[%s1 + $0xc] sm:$0x1]
    %v67 = vmul.f32 %v61, %v19
    %v68 = vmul.f32 %v62, %v19
    %v69 = vmul.f32 %v65, %v21
    %v70 = vmul.f32 %v66, %v21
    %v71 = vadd.f32 %v67, %v69
    %v72 = vadd.f32 %v68, %v70
    %73 = vst.msk [vmem:[#allocation3 + $0x4] sm:$0x1] %vm32, %v71
    %74 = vst.msk [vmem:[#allocation3 + $0xc] sm:$0x1] %vm32, %v72
    %v75 = vld [vmem:[%s1 + $0x5] sm:$0x1]
    %v76 = vld [vmem:[%s1 + $0xd] sm:$0x1]
    %v77 = vmul.f32 %v71, %v19
    %v78 = vmul.f32 %v72, %v19
    %v79 = vmul.f32 %v75, %v21
    %v80 = vmul.f32 %v76, %v21
    %v81 = vadd.f32 %v77, %v79
    %v82 = vadd.f32 %v78, %v80
    %83 = vst.msk [vmem:[#allocation3 + $0x5] sm:$0x1] %vm32, %v81
    %84 = vst.msk [vmem:[#allocation3 + $0xd] sm:$0x1] %vm32, %v82
    %v85 = vld [vmem:[%s1 + $0x6] sm:$0x1]
    %v86 = vld [vmem:[%s1 + $0xe] sm:$0x1]
    %v87 = vmul.f32 %v81, %v19
    %v88 = vmul.f32 %v82, %v19
    %v89 = vmul.f32 %v85, %v21
    %v90 = vmul.f32 %v86, %v21
    %v91 = vadd.f32 %v87, %v89
    %v92 = vadd.f32 %v88, %v90
    %93 = vst.msk [vmem:[#allocation3 + $0x6] sm:$0x1] %vm32, %v91
    %94 = vst.msk [vmem:[#allocation3 + $0xe] sm:$0x1] %vm32, %v92
    %v95 = vld [vmem:[%s1 + $0x7] sm:$0x1]
    %v96 = vld [vmem:[%s1 + $0xf] sm:$0x1]
    %v97 = vmul.f32 %v91, %v19
    %v98 = vmul.f32 %v92, %v19
    %v99 = vmul.f32 %v95, %v21
    %v100 = vmul.f32 %v96, %v21
    %v101 = vadd.f32 %v97, %v99
    %v102 = vadd.f32 %v98, %v100
    %103 = vst.msk [vmem:[#allocation3 + $0x7] sm:$0x1] %vm32, %v101
    %104 = vst.msk [vmem:[#allocation3 + $0xf] sm:$0x1] %vm32, %v102
    %105 = vst.msk [vmem:[#allocation2] sm:$0x1] %vm32, %v101
    %106 = vst.msk [vmem:[#allocation2 + $0x1] sm:$0x1] %vm32, %v102
    // Predicated region
    $region14: #{lru_forward.1} parent=1 // pred_check
      _
    $region15: #{lru_forward.1} parent=1 // pred_check_branch
      %108 = sbr.rel (0) target = $region17
    $region16: #{lru_forward.1} parent=1 // pred_region
      %s110 = ssub.s32 256, 256
      %111 = vsyncadd [#allocation4], %s110
      %s112 = sshll.u32 [#allocation3], 4
      %s113 = int_to_ptr.vmem [resolvable:$true] %s112
      %118 = dma.vmem_to_hbm [thread:$0]  %s113, 256, %s2, [#allocation4], 128, 128, 8
    $region17: #{lru_forward.1} parent=1 // pred_fallthru
      _
    // Predicated region
    $region18: #{lru_forward.1} parent=1 // pred_check
      _
    $region19: #{lru_forward.1} parent=1 // pred_check_branch
      %120 = sbr.rel (0) target = $region21
    $region20: #{lru_forward.1} parent=1 // pred_region
      %121 = dma.done [#allocation4], 256
    $region21: #{lru_forward.1} parent=1 // pred_fallthru
      _
    %122 = vsyncpa [#allocation4], 1

</llo_original>
